<compile_context>
chip_gen: v7x
topology: tpu7x:2x2x1
jax: 0.10.0
libtpu: 0.0.40
codegen_flags: <defaults>
</compile_context>

<pallas_src>
import functools

import jax
import jax.numpy as jnp
from jax import lax
from jax.experimental import pallas as pl
from jax.experimental.pallas import tpu as pltpu

ALPHA = 0.8
GAMMA = 2

LANES = 128
MAX_TILE_ROWS = 8192   # 8192 x 128 x 4B = 4 MiB per f32 input block
CHUNK_ROWS = 512       # inner-loop chunk: bounds live f32 temps to ~256 KiB


def _round_up(x, m):
    return ((x + m - 1) // m) * m


def _bce_elem(x, t):
    """Elementwise BCE from logits, matching torch's clamped-log semantics.

    log(p) = -softplus(-x), log(1-p) = -softplus(x); clamping each log at -100
    is clamping each softplus term at +100.
    """
    sp = jnp.maximum(x, 0.0) + jnp.log1p(jnp.exp(-jnp.abs(x)))
    # NOTE (v7x VPU trim): for hard {0,1} targets this could be
    # jnp.minimum(sp - t * x, 100.0) (3 fewer VPU ops/vreg); the exact
    # two-minimum form is kept so soft targets match torch bit-for-bit.
    return t * jnp.minimum(sp - x, 100.0) + (1.0 - t) * jnp.minimum(sp, 100.0)


def _focal_bce_kernel(x_ref, t_ref, o_ref, *, blocks_per_split, tile_rows,
                      chunk_rows, valid_rows, needs_mask):
    """Accumulates lane-wise partial sums of the per-element BCE into o_ref."""
    c = pl.program_id(0)
    i = pl.program_id(1)

    @pl.when(i == 0)
    def _():
        o_ref[...] = jnp.zeros_like(o_ref)

    num_chunks = tile_rows // chunk_rows
    # Logical (unclamped) row offset of this grid slot.  The index_map may
    # clamp the *fetched* block for ceil-rounded extra slots; the mask below
    # uses the logical offset, so such slots contribute exactly zero.
    row0 = (c * blocks_per_split + i) * tile_rows

    if needs_mask:
        # Hoisted once per grid step (JAX does not CSE broadcast_in_dim).
        row_iota = lax.broadcasted_iota(jnp.int32, (chunk_rows, LANES), 0)

    def chunk_contrib(j, acc):
        if num_chunks == 1:
            x = x_ref[...]
            t = t_ref[...]
            local0 = 0
        else:
            start = pl.multiple_of(j * chunk_rows, chunk_rows)
            x = x_ref[pl.ds(start, chunk_rows), :]
            t = t_ref[pl.ds(start, chunk_rows), :]
            local0 = j * chunk_rows
        x = x.astype(jnp.float32)
        t = t.astype(jnp.float32)
        bce = _bce_elem(x, t)
        if needs_mask:
            limit = valid_rows - row0 - local0
            bce = jnp.where(row_iota < limit, bce, 0.0)
        # (chunk,128) -> (chunk//8, 8, 128) is a free re-tiling; the axis-0 sum
        # is a short chain of vreg-wide VPU adds (no cross-lane XLU reduce).
        return acc + jnp.sum(bce.reshape(chunk_rows // 8, 8, LANES), axis=0)

    zero = jnp.zeros((8, LANES), jnp.float32)
    if num_chunks == 1:
        part = chunk_contrib(0, zero)
    else:
        part = lax.fori_loop(0, num_chunks, chunk_contrib, zero)

    o_ref[...] += part[None, :, :]


def _tensorcores_per_chip():
    # v7x exposes 2 TensorCores per chip; v5e/v6e are single-TC.  Anything we
    # fail to recognize falls back to the safe single-split path.
    try:
        kind = jax.devices()[0].device_kind.lower()
    except Exception:
        return 1
    return 2 if ("v7" in kind or "tpu7" in kind) else 1


def focal_loss(inputs, targets, alpha=ALPHA, gamma=GAMMA, smooth=1):
    """Pallas TPU implementation of FocalLoss.forward (returns a scalar)."""
    del smooth  # unused in the reference forward as well
    x = inputs.reshape(-1)
    t = targets.reshape(-1)
    n = x.shape[0]

    # Sub-128 tail (rare): summed in plain JAX.  Never pad/copy the full array.
    n_main = (n // LANES) * LANES
    total = jnp.float32(0.0)
    if n_main != n:
        total = jnp.sum(
            _bce_elem(x[n_main:].astype(jnp.float32),
                      t[n_main:].astype(jnp.float32)),
            dtype=jnp.float32)

    if n_main > 0:
        n_rows = n_main // LANES
        if n_main == n:
            x2 = x.reshape(n_rows, LANES)
            t2 = t.reshape(n_rows, LANES)
        else:
            x2 = x[:n_main].reshape(n_rows, LANES)
            t2 = t[:n_main].reshape(n_rows, LANES)

        if n_rows <= CHUNK_ROWS:
            tile_rows = _round_up(n_rows, 8)
            chunk_rows = tile_rows
        else:
            tile_rows = min(MAX_TILE_ROWS, _round_up(n_rows, CHUNK_ROWS))
            chunk_rows = CHUNK_ROWS

        total_blocks = pl.cdiv(n_rows, tile_rows)
        n_splits = 2 if (_tensorcores_per_chip() > 1 and total_blocks >= 2) else 1
        blocks_per_split = pl.cdiv(total_blocks, n_splits)
        extra_blocks = n_splits * blocks_per_split - total_blocks
        needs_mask = (total_blocks * tile_rows != n_rows) or (extra_blocks > 0)

        if extra_blocks:
            # Ceil-rounded extra grid slots re-fetch the last real block; the
            # in-kernel logical-row mask zeroes their contribution.
            def in_map(c, i):
                return (jnp.minimum(c * blocks_per_split + i, total_blocks - 1), 0)
        else:
            def in_map(c, i):
                return (c * blocks_per_split + i, 0)

        kernel = functools.partial(
            _focal_bce_kernel,
            blocks_per_split=blocks_per_split,
            tile_rows=tile_rows,
            chunk_rows=chunk_rows,
            valid_rows=n_rows,
            needs_mask=needs_mask,
        )

        if n_splits > 1:
            dim_sem = (pltpu.CORE_PARALLEL, pltpu.ARBITRARY)
        else:
            dim_sem = ("arbitrary", "arbitrary")

        partials = pl.pallas_call(
            kernel,
            out_shape=jax.ShapeDtypeStruct((n_splits, 8, LANES), jnp.float32),
            grid_spec=pltpu.PrefetchScalarGridSpec(
                num_scalar_prefetch=0,
                grid=(n_splits, blocks_per_split),
                in_specs=[
                    pl.BlockSpec((tile_rows, LANES), in_map),
                    pl.BlockSpec((tile_rows, LANES), in_map),
                ],
                out_specs=pl.BlockSpec((1, 8, LANES), lambda c, i: (c, 0, 0)),
            ),
            compiler_params=pltpu.CompilerParams(
                dimension_semantics=dim_sem,
                vmem_limit_bytes=40 * 1024 * 1024,
            ),
        )(x2, t2)
        total = total + jnp.sum(partials, dtype=jnp.float32)

    bce = total / jnp.float32(n)
    m = 1.0 - jnp.exp(-bce)
    if float(gamma) == 2.0:
        mod = m * m  # exact, avoids pow -> log/exp for the default gamma
    else:
        mod = m ** jnp.float32(gamma)
    return jnp.float32(alpha) * mod * bce


def _focal_loss_ref(inputs, targets, alpha=ALPHA, gamma=GAMMA):
    """Pure-JAX reference matching torch semantics (sigmoid + clamped logs)."""
    p = jax.nn.sigmoid(inputs.reshape(-1).astype(jnp.float32))
    t = targets.reshape(-1).astype(jnp.float32)
    log_p = jnp.maximum(jnp.log(p), -100.0)
    log_1mp = jnp.maximum(jnp.log(1.0 - p), -100.0)
    bce = jnp.mean(-(t * log_p + (1.0 - t) * log_1mp))
    return alpha * (1.0 - jnp.exp(-bce)) ** gamma * bce


if __name__ == "__main__":
    key = jax.random.PRNGKey(0)
    k1, k2 = jax.random.split(key)
    # NCHW logits and binary targets, as a segmentation-style loss expects.
    inputs = jax.random.normal(k1, (2, 4, 16, 16), dtype=jnp.float32)
    targets = jax.random.bernoulli(k2, p=0.3, shape=(2, 4, 16, 16)).astype(
        jnp.float32
    )

    loss = jax.block_until_ready(focal_loss(inputs, targets))
    ref = jax.block_until_ready(_focal_loss_ref(inputs, targets))
    assert jnp.allclose(loss, ref, atol=1e-5, rtol=1e-5), (loss, ref)
    print("KERNEL_OK")
</pallas_src>

<mosaic_0001>
module attributes {stable_mosaic.version = 11 : i64} {
  func.func @_focal_bce_kernel(%arg0: i32, %arg1: i32, %arg2: memref<16x128xf32, #tpu.memory_space<vmem>>, %arg3: memref<16x128xf32, #tpu.memory_space<vmem>>, %arg4: memref<1x8x128xf32, #tpu.memory_space<vmem>>) attributes {dimension_semantics = [#tpu.dimension_semantics<arbitrary>, #tpu.dimension_semantics<arbitrary>], iteration_bounds = array<i64: 1, 1>, scalar_prefetch = 0 : i64, scratch_operands = 0 : i64, tpu.core_type = #tpu.core_type<tc>, window_params = [{transform_indices = @transform_0, window_bounds = array<i64: 16, 128>}, {transform_indices = @transform_1, window_bounds = array<i64: 16, 128>}, {transform_indices = @transform_2, window_bounds = array<i64: 1, 8, 128>}]} {
    %c0_i32 = arith.constant 0 : i32
    %0 = arith.cmpi eq, %arg1, %c0_i32 : i32
    %1 = arith.extui %0 : i1 to i32
    %c0_i32_0 = arith.constant 0 : i32
    %2 = arith.cmpi ne, %1, %c0_i32_0 : i32
    scf.if %2 {
      %cst_16 = arith.constant 0.000000e+00 : f32
      %31 = vector.broadcast %cst_16 : f32 to vector<1x8x128xf32>
      %c0_17 = arith.constant 0 : index
      %c0_18 = arith.constant 0 : index
      %c0_19 = arith.constant 0 : index
      %32 = vector.load %arg4[%c0_17, %c0_18, %c0_19] : memref<1x8x128xf32, #tpu.memory_space<vmem>>, vector<1x8x128xf32>
      tpu.vector_store %arg4[%c0_17, %c0_18, %c0_19], %31 {strides = array<i32>} : memref<1x8x128xf32, #tpu.memory_space<vmem>>, vector<1x8x128xf32>,
    } else {
    }
    %cst = arith.constant 0.000000e+00 : f32
    %3 = vector.broadcast %cst : f32 to vector<8x128xf32>
    %c0 = arith.constant 0 : index
    %c0_1 = arith.constant 0 : index
    %4 = vector.load %arg2[%c0, %c0_1] : memref<16x128xf32, #tpu.memory_space<vmem>>, vector<16x128xf32>
    %c0_2 = arith.constant 0 : index
    %c0_3 = arith.constant 0 : index
    %5 = vector.load %arg3[%c0_2, %c0_3] : memref<16x128xf32, #tpu.memory_space<vmem>>, vector<16x128xf32>
    %cst_4 = arith.constant 0.000000e+00 : f32
    %6 = vector.broadcast %cst_4 : f32 to vector<16x128xf32>
    %7 = arith.maximumf %4, %6 : vector<16x128xf32>
    %8 = math.absf %4 : vector<16x128xf32>
    %cst_5 = arith.constant 0.000000e+00 : f32
    %9 = vector.broadcast %cst_5 : f32 to vector<16x128xf32>
    %10 = arith.subf %9, %8 : vector<16x128xf32>
    %11 = math.exp %10 : vector<16x128xf32>
    %12 = math.log1p %11 : vector<16x128xf32>
    %13 = arith.addf %7, %12 : vector<16x128xf32>
    %14 = arith.subf %13, %4 : vector<16x128xf32>
    %cst_6 = arith.constant 1.000000e+02 : f32
    %15 = vector.broadcast %cst_6 : f32 to vector<16x128xf32>
    %16 = arith.minimumf %14, %15 : vector<16x128xf32>
    %17 = arith.mulf %5, %16 : vector<16x128xf32>
    %cst_7 = arith.constant 1.000000e+00 : f32
    %18 = vector.broadcast %cst_7 : f32 to vector<16x128xf32>
    %19 = arith.subf %18, %5 : vector<16x128xf32>
    %cst_8 = arith.constant 1.000000e+02 : f32
    %20 = vector.broadcast %cst_8 : f32 to vector<16x128xf32>
    %21 = arith.minimumf %13, %20 : vector<16x128xf32>
    %22 = arith.mulf %19, %21 : vector<16x128xf32>
    %23 = arith.addf %17, %22 : vector<16x128xf32>
    %24 = vector.shape_cast %23 : vector<16x128xf32> to vector<2x8x128xf32>
    %cst_9 = arith.constant dense<0.000000e+00> : vector<8x128xf32>
    %25 = vector.multi_reduction <add>, %24, %cst_9 [0] : vector<2x8x128xf32> to vector<8x128xf32>
    %26 = arith.addf %3, %25 : vector<8x128xf32>
    %c0_10 = arith.constant 0 : index
    %c0_11 = arith.constant 0 : index
    %c0_12 = arith.constant 0 : index
    %27 = vector.load %arg4[%c0_10, %c0_11, %c0_12] : memref<1x8x128xf32, #tpu.memory_space<vmem>>, vector<1x8x128xf32>
    %28 = vector.shape_cast %26 : vector<8x128xf32> to vector<1x8x128xf32>
    %29 = arith.addf %27, %28 : vector<1x8x128xf32>
    %c0_13 = arith.constant 0 : index
    %c0_14 = arith.constant 0 : index
    %c0_15 = arith.constant 0 : index
    %30 = vector.load %arg4[%c0_13, %c0_14, %c0_15] : memref<1x8x128xf32, #tpu.memory_space<vmem>>, vector<1x8x128xf32>
    tpu.vector_store %arg4[%c0_13, %c0_14, %c0_15], %29 {strides = array<i32>} : memref<1x8x128xf32, #tpu.memory_space<vmem>>, vector<1x8x128xf32>,
    return
  }
  func.func @transform_0(%arg0: i32, %arg1: i32) -> (i32, i32) {
    %c1_i32 = arith.constant 1 : i32
    %0 = arith.muli %arg0, %c1_i32 : i32
    %1 = arith.addi %0, %arg1 : i32
    %c0_i32 = arith.constant 0 : i32
    %c0_i32_0 = arith.constant 0 : i32
    return %1, %c0_i32 : i32, i32
  }
  func.func @transform_1(%arg0: i32, %arg1: i32) -> (i32, i32) {
    %c1_i32 = arith.constant 1 : i32
    %0 = arith.muli %arg0, %c1_i32 : i32
    %1 = arith.addi %0, %arg1 : i32
    %c0_i32 = arith.constant 0 : i32
    %c0_i32_0 = arith.constant 0 : i32
    return %1, %c0_i32 : i32, i32
  }
  func.func @transform_2(%arg0: i32, %arg1: i32) -> (i32, i32, i32) {
    %c0_i32 = arith.constant 0 : i32
    %c0_i32_0 = arith.constant 0 : i32
    %c0_i32_1 = arith.constant 0 : i32
    return %arg0, %c0_i32, %c0_i32_0 : i32, i32, i32
  }
}

</mosaic_0001>

<llo_original>
// kernel: tpu_custom_call.1
$region0: #{tpu_custom_call.1}
  #allocation0 [shape = 'u32[]', space=smem, size = 0x4, offset = 0x4, fixed_abs, tag = 'smem constant byte address 0x4 - core index']
  #allocation1 [shape = 'u32[144,128]{1,0:T(1,128)}', space=vmem, size = 0x12000, scoped, tag = 'internal scratch']
  %s0 = inlined_call_operand.hbm [shape: f32[16,128], index: 0, kind: input, shape index: {}]
  %s1 = inlined_call_operand.hbm [shape: f32[16,128], index: 1, kind: input, shape index: {}]
  %s2 = inlined_call_operand.hbm [shape: f32[1,8,128], index: 2, kind: output, shape index: {}]
  %s3 = sld [smem:[#allocation0]]
  $region30: #{tpu_custom_call.1} parent=0
    _
  %s5 = ssub.s32 1, %s3
  %s6 = scalar_select 0, %s5, %s3
  $region1: #{tpu_custom_call.1} parent=0
    #allocation2 [shape = 'u8[8192]{0}', space=vmem, size = 0x2000, scoped, tag = 'input window, operand 0, single buffered']
    #allocation3 [shape = 's32[1]{0}', space=sflag, size = 0x4, scoped, tag = 'scoped memory for tpu_custom_call.1']
    #allocation4 [shape = 's32[1]{0}', space=sflag, size = 0x4, scoped, tag = 'scoped memory for tpu_custom_call.1']
    #allocation5 [shape = 'u8[8192]{0}', space=vmem, size = 0x2000, scoped, tag = 'input window, operand 1, single buffered']
    #allocation6 [shape = 's32[1]{0}', space=sflag, size = 0x4, scoped, tag = 'scoped memory for tpu_custom_call.1']
    #allocation7 [shape = 'u8[4096]{0}', space=vmem, size = 0x1000, scoped, tag = 'output window, operand 0, single buffered']
    %7 = vsyncpa [#allocation3], 0
    %8 = vsyncpa [#allocation6], 0
    %9 = vsyncpa [#allocation4], 0
    // Predicated region
    $region2: #{tpu_custom_call.1} parent=1 // pred_check
      _
    $region3: #{tpu_custom_call.1} parent=1 // pred_check_branch
      %11 = sbr.rel (0) target = $region5
    $region4: #{tpu_custom_call.1} parent=1 // pred_region
      %s12 = sadd.s32 0, 0
      %s13 = smul.u32 2, %s12
      %s15 = ssub.s32 256, 256
      %16 = vsyncadd [#allocation3], %s15
      %s17 = smul.addr %s13, 128
      %s18 = scalar_lea.hbm %s0, %s17
      %s19 = sshll.u32 [#allocation2], 4
      %s20 = int_to_ptr.vmem [resolvable:$true] %s19
      %25 = dma.hbm_to_vmem [thread:$0]  %s18, 256, %s20, [#allocation3], 128, 128, 8
    $region5: #{tpu_custom_call.1} parent=1 // pred_fallthru
      _
    // Predicated region
    $region6: #{tpu_custom_call.1} parent=1 // pred_check
      _
    $region7: #{tpu_custom_call.1} parent=1 // pred_check_branch
      %27 = sbr.rel (0) target = $region9
    $region8: #{tpu_custom_call.1} parent=1 // pred_region
      %s28 = sadd.s32 0, 0
      %s29 = smul.u32 2, %s28
      %s31 = ssub.s32 256, 256
      %32 = vsyncadd [#allocation6], %s31
      %s33 = smul.addr %s29, 128
      %s34 = scalar_lea.hbm %s1, %s33
      %s35 = sshll.u32 [#allocation5], 4
      %s36 = int_to_ptr.vmem [resolvable:$true] %s35
      %41 = dma.hbm_to_vmem [thread:$0]  %s34, 256, %s36, [#allocation6], 128, 128, 8
    $region9: #{tpu_custom_call.1} parent=1 // pred_fallthru
      _
    // Predicated region
    $region10: #{tpu_custom_call.1} parent=1 // pred_check
      _
    $region11: #{tpu_custom_call.1} parent=1 // pred_check_branch
      %43 = sbr.rel (0) target = $region13
    $region12: #{tpu_custom_call.1} parent=1 // pred_region
      %44 = dma.done [#allocation3], 256
    $region13: #{tpu_custom_call.1} parent=1 // pred_fallthru
      _
    // Predicated region
    $region14: #{tpu_custom_call.1} parent=1 // pred_check
      _
    $region15: #{tpu_custom_call.1} parent=1 // pred_check_branch
      %46 = sbr.rel (0) target = $region17
    $region16: #{tpu_custom_call.1} parent=1 // pred_region
      %47 = dma.done [#allocation6], 256
    $region17: #{tpu_custom_call.1} parent=1 // pred_fallthru
      _
    %s48 = sadd.s32 0, 0
    %s49 = smul.u32 2, %s48
    %s50 = sadd.s32 0, 0
    %s51 = smul.u32 2, %s50
    %p52 = scmp.eq.s32.totalorder 0, 0
    // Predicated region
    $region18: #{tpu_custom_call.1} parent=1 // pred_check
      %p53 = pneg %p52
    $region19: #{tpu_custom_call.1} parent=1 // pred_check_branch
      %55 = sbr.rel (%p53) target = $region21
    $region20: #{tpu_custom_call.1} parent=1 // pred_region
      %56 = vst [vmem:[#allocation7] sm:$0xff] 0.0
    $region21: #{tpu_custom_call.1} parent=1 // pred_fallthru
      _
    %v57 = vld [vmem:[#allocation2] sm:$0xff]
    %v58 = vld [vmem:[#allocation2 + $0x8] sm:$0xff]
    %v59 = vld [vmem:[#allocation5] sm:$0xff]
    %v60 = vld [vmem:[#allocation5 + $0x8] sm:$0xff]
    %v61 = vmax.f32 %v57, 0.0
    %v62 = vmax.f32 %v58, 0.0
    %v63 = vand.u32 2147483647, %v57
    %v64 = vand.u32 2147483647, %v58
    %v65 = vsub.f32 0.0, %v63
    %v66 = vsub.f32 0.0, %v64
    %v67 = vmul.f32 %v65, 1.442695
    %v68 = vpow.pop %v67
    %v69 = vmul.f32 %v66, 1.442695
    %v70 = vpow.pop %v69
    %v71 = vadd.f32 %v68, 1.0
    %v72 = vlog2.pop %v71
    %v73 = vmul.f32 %v72, 0.6931472
    %v74 = vmul.f32 -0.5, %v68
    %v75 = vadd.f32 %v74, 1.0
    %v76 = vmul.f32 %v75, %v68
    %v77 = vand.u32 2147483647, %v68
    %vm78 = vcmp.lt.f32.partialorder %v77, 0.0004427343
    %v79 = vsel %vm78, %v76, %v73
    %v80 = vadd.f32 %v70, 1.0
    %v81 = vlog2.pop %v80
    %v82 = vmul.f32 %v81, 0.6931472
    %v83 = vmul.f32 -0.5, %v70
    %v84 = vadd.f32 %v83, 1.0
    %v85 = vmul.f32 %v84, %v70
    %v86 = vand.u32 2147483647, %v70
    %vm87 = vcmp.lt.f32.partialorder %v86, 0.0004427343
    %v88 = vsel %vm87, %v85, %v82
    %v89 = vadd.f32 %v61, %v79
    %v90 = vadd.f32 %v62, %v88
    %v91 = vsub.f32 %v89, %v57
    %v92 = vsub.f32 %v90, %v58
    %v93 = vmin.f32 %v91, 100.0
    %v94 = vmin.f32 %v92, 100.0
    %v95 = vmul.f32 %v59, %v93
    %v96 = vmul.f32 %v60, %v94
    %v97 = vsub.f32 1.0, %v59
    %v98 = vsub.f32 1.0, %v60
    %v99 = vmin.f32 %v89, 100.0
    %v100 = vmin.f32 %v90, 100.0
    %v101 = vmul.f32 %v97, %v99
    %v102 = vmul.f32 %v98, %v100
    %v103 = vadd.f32 %v95, %v101
    %v104 = vadd.f32 %v96, %v102
    %v105 = vadd.f32 %v103, %v104
    %v106 = vadd.f32 %v105, 0.0
    %v107 = vld [vmem:[#allocation7] sm:$0xff]
    %v108 = vadd.f32 %v107, %v106
    %109 = vst [vmem:[#allocation7] sm:$0xff] %v108
    // Predicated region
    $region22: #{tpu_custom_call.1} parent=1 // pred_check
      _
    $region23: #{tpu_custom_call.1} parent=1 // pred_check_branch
      %111 = sbr.rel (0) target = $region25
    $region24: #{tpu_custom_call.1} parent=1 // pred_region
      %s113 = ssub.s32 128, 128
      %114 = vsyncadd [#allocation4], %s113
      %s116 = sshll.u32 [#allocation7], 4
      %s117 = int_to_ptr.vmem [resolvable:$true] %s116
      %119 = dma.vmem_to_hbm [thread:$0]  %s117, 128, %s2, [#allocation4]
    $region25: #{tpu_custom_call.1} parent=1 // pred_fallthru
      _
    // Predicated region
    $region26: #{tpu_custom_call.1} parent=1 // pred_check
      _
    $region27: #{tpu_custom_call.1} parent=1 // pred_check_branch
      %121 = sbr.rel (0) target = $region29
    $region28: #{tpu_custom_call.1} parent=1 // pred_region
      %122 = dma.done [#allocation4], 128
    $region29: #{tpu_custom_call.1} parent=1 // pred_fallthru
      _
    %123 = vsyncpa [#allocation3], 1
    %124 = vsyncpa [#allocation6], 1
    %125 = vsyncpa [#allocation4], 1

</llo_original>
